<compile_context>
chip_gen: v6e
topology: v6e:2x2x1
jax: 0.10.0
libtpu: 0.0.40
codegen_flags: <defaults>
</compile_context>

<pallas_src>
import functools
import math

import jax
import jax.numpy as jnp
from jax.experimental import pallas as pl
from jax.experimental.pallas import tpu as pltpu

_HALF_LOG_2PI = 0.5 * math.log(2.0 * math.pi)
_LANES = 128


def _mgnll_kernel(means_ref, stds_ref, w_ref, y_ref, out_ref, *,
                  total_rows, tile_cols):
    i = pl.program_id(0)

    mu = means_ref[...].astype(jnp.float32)      # (K, TC)
    sd = stds_ref[...].astype(jnp.float32)       # (K, TC)
    w = w_ref[...].astype(jnp.float32)           # (K, TC)
    y = y_ref[...].astype(jnp.float32)           # (1 or K, TC), bcast over K

    # log N(y | mu, sd) + log w = -0.5*z^2 + log(w/sd) - 0.5*log(2*pi)
    # Exact reciprocal: approx=True would feed ~1e-4 error into the log term.
    inv_sd = pl.reciprocal(sd)
    z = (y - mu) * inv_sd
    wll = jnp.log(w * inv_sd) - 0.5 * (z * z) - jnp.float32(_HALF_LOG_2PI)

    # logsumexp over the mixture components (sublane axis); keep 2-D shapes.
    m = jnp.max(wll, axis=0, keepdims=True)                              # (1, TC)
    lse = m + jnp.log(jnp.sum(jnp.exp(wll - m), axis=0, keepdims=True))  # (1, TC)
    nll = -lse

    # Mask columns beyond the real row count (ragged last tile reads garbage
    # since the wrapper no longer pads; the select discards any NaN/Inf).
    col = jax.lax.broadcasted_iota(jnp.int32, nll.shape, 1) + i * tile_cols
    nll = jnp.where(col < total_rows, nll, jnp.float32(0.0))

    # Per-lane partial sums with 8 independent accumulators (no long serial
    # add chain), written as a dense (8, 128) output block.
    n_chunks = tile_cols // _LANES
    n_acc = min(8, n_chunks)
    accs = [nll[:, j * _LANES:(j + 1) * _LANES] for j in range(n_acc)]
    for j in range(n_acc, n_chunks):
        a = j % n_acc
        accs[a] = accs[a] + nll[:, j * _LANES:(j + 1) * _LANES]
    zero_row = jnp.zeros((1, _LANES), jnp.float32)
    for j in range(8):
        row = accs[j] if j < n_acc else zero_row
        out_ref[pl.ds(j, 1), :] = row


def mixture_gaussian_nll_loss(means, std_devs, weights, y_true, *,
                              tile_cols=None,
                              vmem_budget_bytes=12 * 1024 * 1024):
    """means/std_devs/weights: (..., K); y_true: (..., 1) or (..., K).

    Inputs may be f32 or bf16 (kernel upcasts to f32 internally).
    Returns the scalar mean NLL (float32), matching the PyTorch module.
    """
    K = means.shape[-1]
    R = int(math.prod(means.shape[:-1])) if means.ndim > 1 else 1
    if R == 0:
        return jnp.float32(float("nan"))   # torch .mean() of empty is NaN

    # Lane-dense layout: rows on the lane (last) axis, K on the sublane axis.
    # For small K this one transpose pass is cheaper than the 16x vreg waste
    # of consuming the natural (R, K) layout in-kernel.
    means2 = means.reshape(R, K).T                       # (K, R)
    stds2 = std_devs.reshape(R, K).T                     # (K, R)
    w2 = weights.reshape(R, K).T                         # (K, R)
    if y_true.shape[-1] == K and K != 1:
        y2 = y_true.reshape(R, K).T                      # (K, R)
        yk = K
    else:
        y2 = y_true.reshape(1, R)                        # free contiguous reshape
        yk = 1

    # K-aware tile size: largest multiple of 128 lanes whose double-buffered
    # input blocks fit the VMEM budget (fits v5e 16 MiB scoped / v7x 64 MiB
    # physical), capped at 32768 and at the (rounded-up) row count.
    itemsize = max(jnp.dtype(means.dtype).itemsize, 1)
    col_bytes = 2 * (3 * K + yk) * itemsize              # 2 pipeline buffers
    cap = max(_LANES, (vmem_budget_bytes // col_bytes) // _LANES * _LANES)
    cap = min(cap, 32768)
    if tile_cols is None:
        tile_cols = cap
    else:
        tile_cols = min(cap, max(_LANES, (int(tile_cols) // _LANES) * _LANES))

    r_up = pl.cdiv(R, _LANES) * _LANES                   # rows rounded to lanes
    split4 = pl.cdiv(R, 4 * _LANES) * _LANES             # ~R/4: keep >=4 tiles
    tile_cols = max(_LANES, min(tile_cols, r_up, max(split4, 4096)))
    num_tiles = pl.cdiv(R, tile_cols)

    kernel = functools.partial(_mgnll_kernel, total_rows=R,
                               tile_cols=tile_cols)

    partials = pl.pallas_call(
        kernel,
        out_shape=jax.ShapeDtypeStruct((num_tiles * 8, _LANES), jnp.float32),
        grid_spec=pltpu.PrefetchScalarGridSpec(
            num_scalar_prefetch=0,
            grid=(num_tiles,),
            in_specs=[
                pl.BlockSpec((K, tile_cols), lambda i: (0, i)),
                pl.BlockSpec((K, tile_cols), lambda i: (0, i)),
                pl.BlockSpec((K, tile_cols), lambda i: (0, i)),
                pl.BlockSpec((yk, tile_cols), lambda i: (0, i)),
            ],
            out_specs=pl.BlockSpec((8, _LANES), lambda i: (i, 0)),
        ),
        compiler_params=pltpu.CompilerParams(
            dimension_semantics=("parallel",),
            vmem_limit_bytes=32 * 1024 * 1024),
    )(means2, stds2, w2, y2)

    # Finish the mean over all rows (per-block lane-partials -> scalar).
    return jnp.sum(partials) / jnp.float32(R)


def _reference(means, std_devs, weights, y_true):
    ll = (-0.5 * ((y_true - means) ** 2) / (std_devs ** 2)
          - jnp.log(std_devs) - 0.5 * jnp.log(2.0 * jnp.pi))
    wll = ll + jnp.log(weights)
    lse = jax.scipy.special.logsumexp(wll, axis=-1)
    return jnp.mean(-lse)


if __name__ == "__main__":
    key = jax.random.PRNGKey(0)
    B, N, K = 2, 64, 8
    k1, k2, k3, k4 = jax.random.split(key, 4)

    means = jax.random.normal(k1, (B, N, K), dtype=jnp.float32)
    std_devs = jax.nn.softplus(jax.random.normal(k2, (B, N, K))) + 0.1
    weights = jax.nn.softmax(jax.random.normal(k3, (B, N, K)), axis=-1)
    y_true = jax.random.normal(k4, (B, N, 1), dtype=jnp.float32)

    nll = mixture_gaussian_nll_loss(means, std_devs, weights, y_true)
    nll = jax.block_until_ready(nll)

    ref = _reference(means, std_devs, weights, y_true)
    assert jnp.allclose(nll, ref, rtol=1e-5, atol=1e-5), (nll, ref)
    print("KERNEL_OK")
</pallas_src>

<mosaic_0001>
module attributes {stable_mosaic.version = 11 : i64} {
  func.func @_mgnll_kernel(%arg0: i32, %arg1: memref<8x128xf32, #tpu.memory_space<vmem>>, %arg2: memref<8x128xf32, #tpu.memory_space<vmem>>, %arg3: memref<8x128xf32, #tpu.memory_space<vmem>>, %arg4: memref<1x128xf32, #tpu.memory_space<vmem>>, %arg5: memref<8x128xf32, #tpu.memory_space<vmem>>) attributes {dimension_semantics = [#tpu.dimension_semantics<parallel>], iteration_bounds = array<i64: 1>, scalar_prefetch = 0 : i64, scratch_operands = 0 : i64, tpu.core_type = #tpu.core_type<tc>, window_params = [{transform_indices = @transform_0, window_bounds = array<i64: 8, 128>}, {transform_indices = @transform_1, window_bounds = array<i64: 8, 128>}, {transform_indices = @transform_2, window_bounds = array<i64: 8, 128>}, {transform_indices = @transform_3, window_bounds = array<i64: 1, 128>}, {transform_indices = @transform_4, window_bounds = array<i64: 8, 128>}]} {
    %c0 = arith.constant 0 : index
    %c0_0 = arith.constant 0 : index
    %0 = vector.load %arg1[%c0, %c0_0] : memref<8x128xf32, #tpu.memory_space<vmem>>, vector<8x128xf32>
    %c0_1 = arith.constant 0 : index
    %c0_2 = arith.constant 0 : index
    %1 = vector.load %arg2[%c0_1, %c0_2] : memref<8x128xf32, #tpu.memory_space<vmem>>, vector<8x128xf32>
    %c0_3 = arith.constant 0 : index
    %c0_4 = arith.constant 0 : index
    %2 = vector.load %arg3[%c0_3, %c0_4] : memref<8x128xf32, #tpu.memory_space<vmem>>, vector<8x128xf32>
    %c0_5 = arith.constant 0 : index
    %c0_6 = arith.constant 0 : index
    %3 = vector.load %arg4[%c0_5, %c0_6] : memref<1x128xf32, #tpu.memory_space<vmem>>, vector<1x128xf32>
    %4 = tpu.reciprocal %1 : vector<8x128xf32> -> vector<8x128xf32>
    %5 = vector.broadcast %3 : vector<1x128xf32> to vector<8x128xf32>
    %6 = arith.subf %5, %0 : vector<8x128xf32>
    %7 = arith.mulf %6, %4 : vector<8x128xf32>
    %8 = arith.mulf %2, %4 : vector<8x128xf32>
    %9 = math.log %8 : vector<8x128xf32>
    %10 = arith.mulf %7, %7 : vector<8x128xf32>
    %cst = arith.constant 5.000000e-01 : f32
    %11 = vector.broadcast %cst : f32 to vector<8x128xf32>
    %12 = arith.mulf %11, %10 : vector<8x128xf32>
    %13 = arith.subf %9, %12 : vector<8x128xf32>
    %cst_7 = arith.constant 0.918938517 : f32
    %14 = vector.broadcast %cst_7 : f32 to vector<8x128xf32>
    %15 = arith.subf %13, %14 : vector<8x128xf32>
    %cst_8 = arith.constant dense<0xFF800000> : vector<128xf32>
    %16 = vector.multi_reduction <maximumf>, %15, %cst_8 [0] : vector<8x128xf32> to vector<128xf32>
    %17 = vector.shape_cast %16 : vector<128xf32> to vector<1x128xf32>
    %18 = vector.broadcast %17 : vector<1x128xf32> to vector<8x128xf32>
    %19 = arith.subf %15, %18 : vector<8x128xf32>
    %20 = math.exp %19 : vector<8x128xf32>
    %cst_9 = arith.constant dense<0.000000e+00> : vector<128xf32>
    %21 = vector.multi_reduction <add>, %20, %cst_9 [0] : vector<8x128xf32> to vector<128xf32>
    %22 = vector.shape_cast %21 : vector<128xf32> to vector<1x128xf32>
    %23 = math.log %22 : vector<1x128xf32>
    %24 = arith.addf %17, %23 : vector<1x128xf32>
    %cst_10 = arith.constant 0.000000e+00 : f32
    %25 = vector.broadcast %cst_10 : f32 to vector<1x128xf32>
    %26 = arith.subf %25, %24 : vector<1x128xf32>
    %27 = tpu.iota {dimensions = array<i32: 1>} : vector<1x128xi32>
    %c128_i32 = arith.constant 128 : i32
    %28 = arith.muli %arg0, %c128_i32 : i32
    %29 = vector.broadcast %28 : i32 to vector<1x128xi32>
    %30 = arith.addi %27, %29 : vector<1x128xi32>
    %c128_i32_11 = arith.constant 128 : i32
    %31 = vector.broadcast %c128_i32_11 : i32 to vector<1x128xi32>
    %32 = arith.cmpi slt, %30, %31 : vector<1x128xi32>
    %cst_12 = arith.constant 0.000000e+00 : f32
    %33 = vector.broadcast %cst_12 : f32 to vector<1x128xf32>
    %34 = arith.select %32, %26, %33 : vector<1x128xi1>, vector<1x128xf32>
    %cst_13 = arith.constant 0.000000e+00 : f32
    %35 = vector.broadcast %cst_13 : f32 to vector<1x128xf32>
    %c0_14 = arith.constant 0 : index
    %c0_15 = arith.constant 0 : index
    %36 = vector.load %arg5[%c0_14, %c0_15] : memref<8x128xf32, #tpu.memory_space<vmem>>, vector<1x128xf32>
    tpu.vector_store %arg5[%c0_14, %c0_15], %34 {strides = array<i32>} : memref<8x128xf32, #tpu.memory_space<vmem>>, vector<1x128xf32>,
    %c1 = arith.constant 1 : index
    %c0_16 = arith.constant 0 : index
    %37 = vector.load %arg5[%c1, %c0_16] : memref<8x128xf32, #tpu.memory_space<vmem>>, vector<1x128xf32>
    tpu.vector_store %arg5[%c1, %c0_16], %35 {strides = array<i32>} : memref<8x128xf32, #tpu.memory_space<vmem>>, vector<1x128xf32>,
    %c2 = arith.constant 2 : index
    %c0_17 = arith.constant 0 : index
    %38 = vector.load %arg5[%c2, %c0_17] : memref<8x128xf32, #tpu.memory_space<vmem>>, vector<1x128xf32>
    tpu.vector_store %arg5[%c2, %c0_17], %35 {strides = array<i32>} : memref<8x128xf32, #tpu.memory_space<vmem>>, vector<1x128xf32>,
    %c3 = arith.constant 3 : index
    %c0_18 = arith.constant 0 : index
    %39 = vector.load %arg5[%c3, %c0_18] : memref<8x128xf32, #tpu.memory_space<vmem>>, vector<1x128xf32>
    tpu.vector_store %arg5[%c3, %c0_18], %35 {strides = array<i32>} : memref<8x128xf32, #tpu.memory_space<vmem>>, vector<1x128xf32>,
    %c4 = arith.constant 4 : index
    %c0_19 = arith.constant 0 : index
    %40 = vector.load %arg5[%c4, %c0_19] : memref<8x128xf32, #tpu.memory_space<vmem>>, vector<1x128xf32>
    tpu.vector_store %arg5[%c4, %c0_19], %35 {strides = array<i32>} : memref<8x128xf32, #tpu.memory_space<vmem>>, vector<1x128xf32>,
    %c5 = arith.constant 5 : index
    %c0_20 = arith.constant 0 : index
    %41 = vector.load %arg5[%c5, %c0_20] : memref<8x128xf32, #tpu.memory_space<vmem>>, vector<1x128xf32>
    tpu.vector_store %arg5[%c5, %c0_20], %35 {strides = array<i32>} : memref<8x128xf32, #tpu.memory_space<vmem>>, vector<1x128xf32>,
    %c6 = arith.constant 6 : index
    %c0_21 = arith.constant 0 : index
    %42 = vector.load %arg5[%c6, %c0_21] : memref<8x128xf32, #tpu.memory_space<vmem>>, vector<1x128xf32>
    tpu.vector_store %arg5[%c6, %c0_21], %35 {strides = array<i32>} : memref<8x128xf32, #tpu.memory_space<vmem>>, vector<1x128xf32>,
    %c7 = arith.constant 7 : index
    %c0_22 = arith.constant 0 : index
    %43 = vector.load %arg5[%c7, %c0_22] : memref<8x128xf32, #tpu.memory_space<vmem>>, vector<1x128xf32>
    tpu.vector_store %arg5[%c7, %c0_22], %35 {strides = array<i32>} : memref<8x128xf32, #tpu.memory_space<vmem>>, vector<1x128xf32>,
    return
  }
  func.func @transform_0(%arg0: i32) -> (i32, i32) {
    %c0_i32 = arith.constant 0 : i32
    %c0_i32_0 = arith.constant 0 : i32
    return %c0_i32, %arg0 : i32, i32
  }
  func.func @transform_1(%arg0: i32) -> (i32, i32) {
    %c0_i32 = arith.constant 0 : i32
    %c0_i32_0 = arith.constant 0 : i32
    return %c0_i32, %arg0 : i32, i32
  }
  func.func @transform_2(%arg0: i32) -> (i32, i32) {
    %c0_i32 = arith.constant 0 : i32
    %c0_i32_0 = arith.constant 0 : i32
    return %c0_i32, %arg0 : i32, i32
  }
  func.func @transform_3(%arg0: i32) -> (i32, i32) {
    %c0_i32 = arith.constant 0 : i32
    %c0_i32_0 = arith.constant 0 : i32
    return %c0_i32, %arg0 : i32, i32
  }
  func.func @transform_4(%arg0: i32) -> (i32, i32) {
    %c0_i32 = arith.constant 0 : i32
    %c0_i32_0 = arith.constant 0 : i32
    return %arg0, %c0_i32 : i32, i32
  }
}

</mosaic_0001>

<llo_original>
// kernel: tpu_custom_call.1
$region0: #{tpu_custom_call.1}
  #allocation0 [shape = 'u32[]', space=smem, size = 0x4, offset = 0x4, fixed_abs, tag = 'smem constant byte address 0x4 - core index']
  #allocation1 [shape = 'u32[144,128]{1,0:T(1,128)}', space=vmem, size = 0x12000, scoped, tag = 'internal scratch']
  %s0 = inlined_call_operand.hbm [shape: f32[8,128], index: 0, kind: input, shape index: {}]
  %s1 = inlined_call_operand.hbm [shape: f32[8,128], index: 1, kind: input, shape index: {}]
  %s2 = inlined_call_operand.hbm [shape: f32[8,128], index: 2, kind: input, shape index: {}]
  %s3 = inlined_call_operand.vmem [shape: f32[1,128], index: 3, kind: input, shape index: {}]
  %s4 = inlined_call_operand.hbm [shape: f32[8,128], index: 4, kind: output, shape index: {}]
  %s5 = sld [smem:[#allocation0]]
  $region38: #{tpu_custom_call.1} parent=0
    _
  %s7 = ssub.s32 1, %s5
  %s8 = scalar_select 0, %s7, %s5
  $region1: #{tpu_custom_call.1} parent=0
    #allocation2 [shape = 'u8[4096]{0}', space=vmem, size = 0x1000, scoped, tag = 'input window, operand 0, single buffered']
    #allocation3 [shape = 's32[1]{0}', space=sflag, size = 0x4, scoped, tag = 'scoped memory for tpu_custom_call.1']
    #allocation4 [shape = 's32[1]{0}', space=sflag, size = 0x4, scoped, tag = 'scoped memory for tpu_custom_call.1']
    #allocation5 [shape = 'u8[4096]{0}', space=vmem, size = 0x1000, scoped, tag = 'input window, operand 1, single buffered']
    #allocation6 [shape = 's32[1]{0}', space=sflag, size = 0x4, scoped, tag = 'scoped memory for tpu_custom_call.1']
    #allocation7 [shape = 'u8[4096]{0}', space=vmem, size = 0x1000, scoped, tag = 'input window, operand 2, single buffered']
    #allocation8 [shape = 'u8[4096]{0}', space=vmem, size = 0x1000, scoped, tag = 'output window, operand 0, single buffered']
    %9 = vsyncpa [#allocation3], 0
    %10 = vsyncpa [#allocation6], 0
    %11 = vsyncpa [#allocation4], 0
    // Predicated region
    $region2: #{tpu_custom_call.1} parent=1 // pred_check
      _
    $region3: #{tpu_custom_call.1} parent=1 // pred_check_branch
      %13 = sbr.rel (0) target = $region5
    $region4: #{tpu_custom_call.1} parent=1 // pred_region
      %s15 = ssub.s32 128, 128
      %16 = vsyncadd [#allocation3], %s15
      %s18 = sshll.u32 [#allocation2], 4
      %s19 = int_to_ptr.vmem [resolvable:$true] %s18
      %21 = dma.hbm_to_vmem [thread:$0]  %s0, 128, %s19, [#allocation3]
    $region5: #{tpu_custom_call.1} parent=1 // pred_fallthru
      _
    // Predicated region
    $region6: #{tpu_custom_call.1} parent=1 // pred_check
      _
    $region7: #{tpu_custom_call.1} parent=1 // pred_check_branch
      %23 = sbr.rel (0) target = $region9
    $region8: #{tpu_custom_call.1} parent=1 // pred_region
      %s25 = ssub.s32 128, 128
      %26 = vsyncadd [#allocation6], %s25
      %s28 = sshll.u32 [#allocation5], 4
      %s29 = int_to_ptr.vmem [resolvable:$true] %s28
      %31 = dma.hbm_to_vmem [thread:$0]  %s1, 128, %s29, [#allocation6]
    $region9: #{tpu_custom_call.1} parent=1 // pred_fallthru
      _
    // Predicated region
    $region10: #{tpu_custom_call.1} parent=1 // pred_check
      _
    $region11: #{tpu_custom_call.1} parent=1 // pred_check_branch
      %33 = sbr.rel (0) target = $region13
    $region12: #{tpu_custom_call.1} parent=1 // pred_region
      %s35 = ssub.s32 128, 128
      %36 = vsyncadd [#allocation6], %s35
      %s38 = sshll.u32 [#allocation7], 4
      %s39 = int_to_ptr.vmem [resolvable:$true] %s38
      %41 = dma.hbm_to_vmem [thread:$0]  %s2, 128, %s39, [#allocation6]
    $region13: #{tpu_custom_call.1} parent=1 // pred_fallthru
      _
    // Predicated region
    $region14: #{tpu_custom_call.1} parent=1 // pred_check
      _
    $region15: #{tpu_custom_call.1} parent=1 // pred_check_branch
      %43 = sbr.rel (0) target = $region17
    $region16: #{tpu_custom_call.1} parent=1 // pred_region
      _
    $region17: #{tpu_custom_call.1} parent=1 // pred_fallthru
      _
    // Predicated region
    $region18: #{tpu_custom_call.1} parent=1 // pred_check
      _
    $region19: #{tpu_custom_call.1} parent=1 // pred_check_branch
      %45 = sbr.rel (0) target = $region21
    $region20: #{tpu_custom_call.1} parent=1 // pred_region
      %46 = dma.done [#allocation3], 128
    $region21: #{tpu_custom_call.1} parent=1 // pred_fallthru
      _
    // Predicated region
    $region22: #{tpu_custom_call.1} parent=1 // pred_check
      _
    $region23: #{tpu_custom_call.1} parent=1 // pred_check_branch
      %48 = sbr.rel (0) target = $region25
    $region24: #{tpu_custom_call.1} parent=1 // pred_region
      %49 = dma.done [#allocation6], 128
    $region25: #{tpu_custom_call.1} parent=1 // pred_fallthru
      _
    // Predicated region
    $region26: #{tpu_custom_call.1} parent=1 // pred_check
      _
    $region27: #{tpu_custom_call.1} parent=1 // pred_check_branch
      %51 = sbr.rel (0) target = $region29
    $region28: #{tpu_custom_call.1} parent=1 // pred_region
      %52 = dma.done [#allocation6], 128
    $region29: #{tpu_custom_call.1} parent=1 // pred_fallthru
      _
    %v53 = vld [vmem:[#allocation2] sm:$0xff]
    %v54 = vld [vmem:[#allocation5] sm:$0xff]
    %v55 = vld [vmem:[#allocation7] sm:$0xff]
    %v56 = vld [vmem:[%s3] sm:$0x1]
    %v57 = vrcp.pop %v54
    %v59 = vlaneseq
    %v60 = vshrl.u32 %v59, 7
    %v61 = vsub.s32 0, %v60
    %v62 = vrot.slane %v56, %v61
    %v64 = vsub.f32 %v62, %v53
    %v65 = vmul.f32 %v64, %v57
    %v66 = vmul.f32 %v55, %v57
    %v67 = vlog2.pop %v66
    %v68 = vmul.f32 %v67, 0.6931472
    %v69 = vmul.f32 %v65, %v65
    %v70 = vmul.f32 %v69, 0.5
    %v71 = vsub.f32 %v68, %v70
    %v72 = vsub.f32 %v71, 0.9189385
    %v73 = vrot.slane %v72, 4
    %v74 = vmax.f32 %v72, %v73
    %v75 = vrot.slane %v74, 2
    %v76 = vmax.f32 %v74, %v75
    %v77 = vrot.slane %v76, 1
    %v78 = vmax.f32 %v76, %v77
    %v79 = vsub.f32 %v72, %v78
    %v80 = vmul.f32 %v79, 1.442695
    %v81 = vpow.pop %v80
    %v82 = vrot.slane %v81, 4
    %v83 = vadd.f32 %v81, %v82
    %v84 = vrot.slane %v83, 2
    %v85 = vadd.f32 %v83, %v84
    %v86 = vrot.slane %v85, 1
    %v87 = vadd.f32 %v85, %v86
    %v88 = vlog2.pop %v87
    %v89 = vmul.f32 %v88, 0.6931472
    %v90 = vadd.f32 %v78, %v89
    %v91 = vsub.f32 0.0, %v90
    %v92 = vlaneseq
    %v93 = vand.u32 %v92, 127
    %s94 = smul.u32 0, 128
    %v95 = vstv %s94
    %v96 = vadd.s32 %v93, %v95
    %vm97 = vcmp.lt.s32.totalorder %v96, 128
    %v98 = vsel %vm97, %v91, 0.0
    %99 = vst [vmem:[#allocation8] sm:$0x1] %v98
    %100 = vst [vmem:[#allocation8 + $0x1] sm:$0x1] 0.0
    %101 = vst [vmem:[#allocation8 + $0x2] sm:$0x1] 0.0
    %102 = vst [vmem:[#allocation8 + $0x3] sm:$0x1] 0.0
    %103 = vst [vmem:[#allocation8 + $0x4] sm:$0x1] 0.0
    %104 = vst [vmem:[#allocation8 + $0x5] sm:$0x1] 0.0
    %105 = vst [vmem:[#allocation8 + $0x6] sm:$0x1] 0.0
    %106 = vst [vmem:[#allocation8 + $0x7] sm:$0x1] 0.0
    // Predicated region
    $region30: #{tpu_custom_call.1} parent=1 // pred_check
      _
    $region31: #{tpu_custom_call.1} parent=1 // pred_check_branch
      %108 = sbr.rel (0) target = $region33
    $region32: #{tpu_custom_call.1} parent=1 // pred_region
      %s110 = ssub.s32 128, 128
      %111 = vsyncadd [#allocation4], %s110
      %s113 = sshll.u32 [#allocation8], 4
      %s114 = int_to_ptr.vmem [resolvable:$true] %s113
      %116 = dma.vmem_to_hbm [thread:$0]  %s114, 128, %s4, [#allocation4]
    $region33: #{tpu_custom_call.1} parent=1 // pred_fallthru
      _
    // Predicated region
    $region34: #{tpu_custom_call.1} parent=1 // pred_check
      _
    $region35: #{tpu_custom_call.1} parent=1 // pred_check_branch
      %118 = sbr.rel (0) target = $region37
    $region36: #{tpu_custom_call.1} parent=1 // pred_region
      %119 = dma.done [#allocation4], 128
    $region37: #{tpu_custom_call.1} parent=1 // pred_fallthru
      _
    %120 = vsyncpa [#allocation3], 1
    %121 = vsyncpa [#allocation6], 1
    %122 = vsyncpa [#allocation4], 1

</llo_original>
